<compile_context>
chip_gen: v7x
topology: tpu7x:2x2x1
jax: 0.10.0
libtpu: 0.0.40
codegen_flags: <defaults>
</compile_context>

<pallas_src>
import jax
import jax.numpy as jnp
from jax.experimental import pallas as pl
from jax.experimental.pallas import tpu as pltpu


def linear_add_kernel(x2_ref, w_ref, add_ref, o_ref):
    # x2_ref : (1, IN)  f32 in SMEM  (scalars)
    # w_ref  : (IN, OUT) f32 in VMEM (W^T, i.e. row k = weights for input k)
    # add_ref: (1, OUT) f32 in VMEM  (bias + x3, pre-fused in the wrapper)
    # o_ref  : (1, OUT) f32 in VMEM  (aliased with add_ref's buffer)
    acc = add_ref[...]                       # (1, OUT)
    in_dim = w_ref.shape[0]
    # Statically unrolled K=3 MAC on the VPU: scalar (sreg) * vector row.
    for k in range(in_dim):
        acc = acc + x2_ref[0, k] * w_ref[pl.ds(k, 1), :]
    o_ref[...] = acc


@jax.jit
def model_forward(x2, w, b, x3):
    """x2: (1, IN), w: (OUT, IN) PyTorch layout, b: (OUT,), x3: (1, OUT)."""
    B = x2.shape[0]
    out_dim = w.shape[0]
    w_t = w.T                                    # (IN, OUT) for row-wise MAC
    addend = b.reshape(1, out_dim) + x3          # fuse bias into x3 (one input)
    return pl.pallas_call(
        linear_add_kernel,
        out_shape=jax.ShapeDtypeStruct((B, out_dim), jnp.float32),
        in_specs=[
            pl.BlockSpec(memory_space=pltpu.MemorySpace.SMEM),   # x2 scalars
            pl.BlockSpec(memory_space=pltpu.MemorySpace.VMEM),   # W^T
            pl.BlockSpec(memory_space=pltpu.MemorySpace.VMEM),   # bias + x3
        ],
        out_specs=pl.BlockSpec(memory_space=pltpu.MemorySpace.VMEM),
        input_output_aliases={2: 0},   # accumulate in place over the addend
    )(x2, w_t, addend)


if __name__ == "__main__":
    key = jax.random.PRNGKey(0)
    k_x2, k_w, k_b = jax.random.split(key, 3)

    IN, OUT = 3, 8

    # Inputs mirroring torch.randn(1,3) and torch.arange(8).reshape(1,8).float()
    x2 = jax.random.normal(k_x2, (1, IN), dtype=jnp.float32)
    x3 = jnp.arange(OUT, dtype=jnp.float32).reshape(1, OUT)

    # Deterministic Linear(3, 8) params (PyTorch-style uniform init, seeded).
    bound = 1.0 / jnp.sqrt(float(IN))
    w = jax.random.uniform(k_w, (OUT, IN), minval=-bound, maxval=bound,
                           dtype=jnp.float32)      # PyTorch weight shape (OUT, IN)
    b = jax.random.uniform(k_b, (OUT,), minval=-bound, maxval=bound,
                           dtype=jnp.float32)

    out = model_forward(x2, w, b, x3)
    out = jax.block_until_ready(out)

    # Reference check in plain JAX: Linear(x2) + x3
    ref = x2 @ w.T + b + x3
    assert out.shape == (1, OUT)
    assert jnp.allclose(out, ref, atol=1e-5, rtol=1e-5)

    print("KERNEL_OK")
</pallas_src>

<mosaic_0001>
module attributes {stable_mosaic.version = 11 : i64} {
  func.func @linear_add_kernel(%arg0: memref<1x3xf32, #tpu.memory_space<smem>>, %arg1: memref<3x8xf32, #tpu.memory_space<vmem>>, %arg2: memref<1x8xf32, #tpu.memory_space<vmem>>, %arg3: memref<1x8xf32, #tpu.memory_space<vmem>>) attributes {dimension_semantics = [], scalar_prefetch = 0 : i64, scratch_operands = 0 : i64, tpu.core_type = #tpu.core_type<tc>} {
    %c0 = arith.constant 0 : index
    %c0_0 = arith.constant 0 : index
    %0 = vector.load %arg2[%c0, %c0_0] : memref<1x8xf32, #tpu.memory_space<vmem>>, vector<1x8xf32>
    %c0_1 = arith.constant 0 : index
    %c0_2 = arith.constant 0 : index
    %1 = memref.load %arg0[%c0_1, %c0_2] : memref<1x3xf32, #tpu.memory_space<smem>>
    %c0_3 = arith.constant 0 : index
    %c0_4 = arith.constant 0 : index
    %2 = vector.load %arg1[%c0_3, %c0_4] : memref<3x8xf32, #tpu.memory_space<vmem>>, vector<1x8xf32>
    %3 = vector.broadcast %1 : f32 to vector<1x8xf32>
    %4 = arith.mulf %3, %2 : vector<1x8xf32>
    %5 = arith.addf %0, %4 : vector<1x8xf32>
    %c0_5 = arith.constant 0 : index
    %c1 = arith.constant 1 : index
    %6 = memref.load %arg0[%c0_5, %c1] : memref<1x3xf32, #tpu.memory_space<smem>>
    %c1_6 = arith.constant 1 : index
    %c0_7 = arith.constant 0 : index
    %7 = vector.load %arg1[%c1_6, %c0_7] : memref<3x8xf32, #tpu.memory_space<vmem>>, vector<1x8xf32>
    %8 = vector.broadcast %6 : f32 to vector<1x8xf32>
    %9 = arith.mulf %8, %7 : vector<1x8xf32>
    %10 = arith.addf %5, %9 : vector<1x8xf32>
    %c0_8 = arith.constant 0 : index
    %c2 = arith.constant 2 : index
    %11 = memref.load %arg0[%c0_8, %c2] : memref<1x3xf32, #tpu.memory_space<smem>>
    %c2_9 = arith.constant 2 : index
    %c0_10 = arith.constant 0 : index
    %12 = vector.load %arg1[%c2_9, %c0_10] : memref<3x8xf32, #tpu.memory_space<vmem>>, vector<1x8xf32>
    %13 = vector.broadcast %11 : f32 to vector<1x8xf32>
    %14 = arith.mulf %13, %12 : vector<1x8xf32>
    %15 = arith.addf %10, %14 : vector<1x8xf32>
    %c0_11 = arith.constant 0 : index
    %c0_12 = arith.constant 0 : index
    %16 = vector.load %arg3[%c0_11, %c0_12] : memref<1x8xf32, #tpu.memory_space<vmem>>, vector<1x8xf32>
    tpu.vector_store %arg3[%c0_11, %c0_12], %15 {strides = array<i32>} : memref<1x8xf32, #tpu.memory_space<vmem>>, vector<1x8xf32>,
    return
  }
}

</mosaic_0001>

<llo_original>
// kernel: model_forward.1
$region0: #{model_forward.1}
  #allocation0 [shape = 'u32[]', space=smem, size = 0x4, offset = 0x4, fixed_abs, tag = 'smem constant byte address 0x4 - core index']
  #allocation1 [shape = 'u32[144,128]{1,0:T(1,128)}', space=vmem, size = 0x12000, scoped, tag = 'internal scratch']
  %s0 = inlined_call_operand.vmem [shape: f32[1,3], index: 0, kind: input, shape index: {}]
  %s1 = inlined_call_operand.vmem [shape: f32[3,8], index: 1, kind: input, shape index: {}]
  %s2 = inlined_call_operand.hbm [shape: f32[1,8], index: 2, kind: input, shape index: {}, may-alias: {2,3}]
  %s3 = inlined_call_operand.hbm [shape: f32[1,8], index: 3, kind: output, shape index: {}, may-alias: {2,3}]
  %s4 = sld [smem:[#allocation0]]
  $region30: #{model_forward.1} parent=0
    _
  %s6 = ssub.s32 1, %s4
  %s7 = scalar_select 0, %s6, %s4
  $region1: #{model_forward.1} parent=0
    #allocation2 [shape = 'u8[512]{0}', space=smem, size = 0x200, scoped, tag = 'input window, operand 0, single buffered']
    #allocation3 [shape = 's32[1]{0}', space=sflag, size = 0x4, scoped, tag = 'scoped memory for model_forward.1']
    #allocation4 [shape = 's32[1]{0}', space=sflag, size = 0x4, scoped, tag = 'scoped memory for model_forward.1']
    #allocation5 [shape = 's32[1]{0}', space=sflag, size = 0x4, scoped, tag = 'scoped memory for model_forward.1']
    #allocation6 [shape = 'u8[512]{0}', space=vmem, size = 0x400, scoped, tag = 'input window, operand 2, single buffered']
    #allocation7 [shape = 'u8[512]{0}', space=vmem, size = 0x400, scoped, tag = 'output window, operand 0, single buffered']
    %8 = vsyncpa [#allocation5], 0
    %9 = vsyncpa [#allocation3], 0
    %10 = vsyncpa [#allocation4], 0
    // Predicated region
    $region2: #{model_forward.1} parent=1 // pred_check
      _
    $region3: #{model_forward.1} parent=1 // pred_check_branch
      %12 = sbr.rel (0) target = $region5
    $region4: #{model_forward.1} parent=1 // pred_region
      %s14 = ssub.s32 16, 16
      %15 = vsyncadd [#allocation5], %s14
      %s17 = sshll.u32 %s0, 4
      %s18 = int_to_ptr.vmem [resolvable:$true] %s17
      %20 = dma.vmem_to_smem %s18, 16, [#allocation2], [#allocation5]
    $region5: #{model_forward.1} parent=1 // pred_fallthru
      _
    // Predicated region
    $region6: #{model_forward.1} parent=1 // pred_check
      _
    $region7: #{model_forward.1} parent=1 // pred_check_branch
      %22 = sbr.rel (0) target = $region9
    $region8: #{model_forward.1} parent=1 // pred_region
      _
    $region9: #{model_forward.1} parent=1 // pred_fallthru
      _
    // Predicated region
    $region10: #{model_forward.1} parent=1 // pred_check
      _
    $region11: #{model_forward.1} parent=1 // pred_check_branch
      %24 = sbr.rel (0) target = $region13
    $region12: #{model_forward.1} parent=1 // pred_region
      %s26 = ssub.s32 16, 16
      %27 = vsyncadd [#allocation3], %s26
      %s29 = sshll.u32 [#allocation6], 4
      %s30 = int_to_ptr.vmem [resolvable:$true] %s29
      %32 = dma.hbm_to_vmem [thread:$0]  %s2, 16, %s30, [#allocation3]
    $region13: #{model_forward.1} parent=1 // pred_fallthru
      _
    // Predicated region
    $region14: #{model_forward.1} parent=1 // pred_check
      _
    $region15: #{model_forward.1} parent=1 // pred_check_branch
      %34 = sbr.rel (0) target = $region17
    $region16: #{model_forward.1} parent=1 // pred_region
      %35 = dma.done [#allocation5], 16
    $region17: #{model_forward.1} parent=1 // pred_fallthru
      _
    // Predicated region
    $region18: #{model_forward.1} parent=1 // pred_check
      _
    $region19: #{model_forward.1} parent=1 // pred_check_branch
      %37 = sbr.rel (0) target = $region21
    $region20: #{model_forward.1} parent=1 // pred_region
      %38 = dma.done [#allocation3], 16
    $region21: #{model_forward.1} parent=1 // pred_fallthru
      _
    %39 = sfence
    %v40 = vld [vmem:[#allocation6] sm:$0x1]
    %s41 = sld [smem:[#allocation2]]
    %v42 = vld [vmem:[%s1] sm:$0x1]
    %v43 = vstv %s41
    %v44 = vmul.f32 %v43, %v42
    %v45 = vadd.f32 %v40, %v44
    %s46 = sld [smem:[#allocation2 + $0x1]]
    %v47 = vld [vmem:[%s1 + $0x1] sm:$0x1]
    %v48 = vstv %s46
    %v49 = vmul.f32 %v48, %v47
    %v50 = vadd.f32 %v45, %v49
    %s51 = sld [smem:[#allocation2 + $0x2]]
    %v52 = vld [vmem:[%s1 + $0x2] sm:$0x1]
    %v53 = vstv %s51
    %v54 = vmul.f32 %v53, %v52
    %v55 = vadd.f32 %v50, %v54
    %vm56 = vcmask 57344
    %57 = vst.msk [vmem:[#allocation7] sm:$0x1] %vm56, %v55
    // Predicated region
    $region22: #{model_forward.1} parent=1 // pred_check
      _
    $region23: #{model_forward.1} parent=1 // pred_check_branch
      %59 = sbr.rel (0) target = $region25
    $region24: #{model_forward.1} parent=1 // pred_region
      %s61 = ssub.s32 16, 16
      %62 = vsyncadd [#allocation4], %s61
      %s64 = sshll.u32 [#allocation7], 4
      %s65 = int_to_ptr.vmem [resolvable:$true] %s64
      %67 = dma.vmem_to_hbm [thread:$0]  %s65, 16, %s3, [#allocation4]
    $region25: #{model_forward.1} parent=1 // pred_fallthru
      _
    // Predicated region
    $region26: #{model_forward.1} parent=1 // pred_check
      _
    $region27: #{model_forward.1} parent=1 // pred_check_branch
      %69 = sbr.rel (0) target = $region29
    $region28: #{model_forward.1} parent=1 // pred_region
      %70 = dma.done [#allocation4], 16
    $region29: #{model_forward.1} parent=1 // pred_fallthru
      _
    %71 = vsyncpa [#allocation3], 1
    %72 = vsyncpa [#allocation4], 1
    %73 = vsyncpa [#allocation5], 1

</llo_original>
